<compile_context>
chip_gen: v6e
topology: v6e:2x2x1
jax: 0.10.0
libtpu: 0.0.40
codegen_flags: <defaults>
</compile_context>

<pallas_src>
import functools

import jax
import jax.numpy as jnp
from jax.experimental import pallas as pl
from jax.experimental.pallas import tpu as pltpu

LANE = 128                      # vreg lane width
SMALL_FALLBACK_BYTES = 256 << 10  # below this, skip pallas_call entirely


def _pick_block_bytes() -> int:
    """Generation-aware row-block size (bytes).

    Budget: block * (1 in + 1 out) * 2 double-buffers must fit the chip's
    default scoped VMEM with headroom.  v6e/v7x (32 MiB scoped) -> 4 MiB
    blocks; v5e and older / unknown (16 MiB scoped) -> 2 MiB blocks.
    """
    try:
        kind = jax.devices()[0].device_kind.lower()
    except Exception:  # pragma: no cover - defensive; fall back conservatively
        kind = ""
    if (not kind) or ("v2" in kind) or ("v3" in kind) or ("v4" in kind) or ("v5" in kind):
        return 2 << 20
    return 4 << 20  # v6e / v7x


def _affinity_norm_kernel(x_ref, o_ref, *, inv_factor):
    # f32 intermediate: casts are free filler in an HBM-bound kernel; the
    # multiply runs on the VPU and exp on the EUP (separate bundle slots).
    x = x_ref[...].astype(jnp.float32)
    o_ref[...] = jnp.exp(x * inv_factor).astype(o_ref.dtype)


def _exp_scaled_jnp(x, inv_factor, dtype):
    """Reference / fallback path with the same f32-intermediate numerics."""
    return jnp.exp(x.astype(jnp.float32) * inv_factor).astype(dtype)


def _round_up(n, m):
    return ((n + m - 1) // m) * m


def _pallas_exp_2d(x2d, inv_factor, dtype, tile_rows, donate):
    rows = x2d.shape[0]
    itemsize = jnp.dtype(dtype).itemsize
    n = rows * LANE
    kernel = functools.partial(_affinity_norm_kernel, inv_factor=inv_factor)
    return pl.pallas_call(
        kernel,
        out_shape=jax.ShapeDtypeStruct((rows, LANE), dtype),
        grid=(pl.cdiv(rows, tile_rows),),   # ragged final block masked by Pallas
        in_specs=[pl.BlockSpec((tile_rows, LANE), lambda i: (i, 0))],
        out_specs=pl.BlockSpec((tile_rows, LANE), lambda i: (i, 0)),
        compiler_params=pltpu.CompilerParams(
            dimension_semantics=("parallel",)),
        cost_estimate=pl.CostEstimate(
            flops=n, transcendentals=n, bytes_accessed=2 * n * itemsize),
        input_output_aliases={0: 0} if donate else {},
    )(x2d)


def dino_affinity_norm(affinity, factor: float = 0.1, *,
                       donate_input: bool = False,
                       use_pallas=None,
                       block_bytes=None):
    """Pallas equivalent of DinoAffinityNorm.forward: exp(affinity / factor).

    JAX is functional, so this is out-of-place.  `donate_input=True` aliases
    the kernel's input/output buffers, but true in-place reuse of the caller's
    array additionally requires the caller to jit with donate_argnums and
    numel % 128 == 0 (so the flatten/reshape stays a bitcast).
    `use_pallas=None` auto-selects: tensors below 256 KiB use plain jnp.exp.
    """
    orig_shape = affinity.shape
    dtype = affinity.dtype
    total = affinity.size
    if total == 0:
        return affinity

    inv_factor = 1.0 / float(factor)
    itemsize = jnp.dtype(dtype).itemsize

    if use_pallas is None:
        use_pallas = total * itemsize >= SMALL_FALLBACK_BYTES
    if not use_pallas:
        # Small-tensor fallback: lets XLA fuse, avoids pallas_call launch cost.
        return _exp_scaled_jnp(affinity, inv_factor, dtype)

    flat = affinity.reshape(-1)
    rem = total % LANE
    bulk = total - rem
    rows = bulk // LANE

    if rows == 0:
        # Fewer than 128 elements total: not worth a kernel.
        return _exp_scaled_jnp(affinity, inv_factor, dtype)

    # Dtype-aware sublane multiple: 8 f32, 16 bf16, 32 int8/fp8 (full unmasked vst).
    sub = max(8, 32 // itemsize)
    if block_bytes is None:
        block_bytes = _pick_block_bytes()

    tile_target = max(sub, (block_bytes // (LANE * itemsize)) // sub * sub)
    tile_rows = min(tile_target, _round_up(rows, sub))

    x2d = flat[:bulk].reshape(rows, LANE)  # bitcast when rem == 0
    out2d = _pallas_exp_2d(x2d, inv_factor, dtype, tile_rows,
                           donate=donate_input and rem == 0)
    out_flat = out2d.reshape(-1)

    if rem:
        # Handle the <128-element tail with plain jnp.exp; no full-array
        # pad/slice passes over HBM.
        tail = _exp_scaled_jnp(flat[bulk:], inv_factor, dtype)
        out_flat = jnp.concatenate([out_flat, tail])

    return out_flat.reshape(orig_shape)


if __name__ == "__main__":
    key = jax.random.PRNGKey(0)
    factor = 0.1
    k1, k2, k3, k4 = jax.random.split(key, 4)

    # 1) Primary small NCHW-like test (force the Pallas path so the kernel runs).
    x = jax.random.normal(k1, (2, 4, 16, 16), dtype=jnp.float32)
    out = jax.block_until_ready(dino_affinity_norm(x, factor=factor, use_pallas=True))
    ref = jnp.exp(x / factor)
    assert out.shape == x.shape and out.dtype == x.dtype
    assert jnp.allclose(out, ref, rtol=1e-5, atol=1e-5), "f32 mismatch vs reference"

    # 1b) Auto-select path (small-tensor fallback) must agree.
    out_auto = jax.block_until_ready(dino_affinity_norm(x, factor=factor))
    assert jnp.allclose(out_auto, ref, rtol=1e-5, atol=1e-5), "fallback mismatch"

    # 2) Multi-block pipelined path: small block override -> grid of 8 steps.
    xl = jax.random.normal(k2, (2, 4, 64, 128), dtype=jnp.float32)
    out_l = jax.block_until_ready(
        dino_affinity_norm(xl, factor=factor, use_pallas=True, block_bytes=32 << 10))
    ref_l = jnp.exp(xl / factor)
    assert jnp.allclose(out_l, ref_l, rtol=1e-5, atol=1e-5), "multi-block mismatch"

    # 3) Ragged test: numel % 128 != 0 exercises the bulk-kernel + jnp-tail split.
    xr = jax.random.normal(k3, (3, 5, 13), dtype=jnp.float32)  # 195 elems
    out_r = jax.block_until_ready(
        dino_affinity_norm(xr, factor=factor, use_pallas=True))
    ref_r = jnp.exp(xr / factor)
    assert out_r.shape == xr.shape
    assert jnp.allclose(out_r, ref_r, rtol=1e-5, atol=1e-5), "ragged mismatch"

    # 4) bf16 test: f32 intermediate inside the kernel, bf16 in/out over HBM.
    xb = jax.random.normal(k4, (2, 4, 16, 16), dtype=jnp.bfloat16)
    out_b = jax.block_until_ready(
        dino_affinity_norm(xb, factor=factor, use_pallas=True))
    ref_b = jnp.exp(xb.astype(jnp.float32) / factor)
    assert out_b.dtype == jnp.bfloat16
    assert jnp.allclose(out_b.astype(jnp.float32), ref_b,
                        rtol=1e-2, atol=1e-2), "bf16 mismatch"

    print("KERNEL_OK")
</pallas_src>

<mosaic_0001>
module attributes {stable_mosaic.version = 11 : i64} {
  func.func @_affinity_norm_kernel(%arg0: i32, %arg1: memref<16x128xf32, #tpu.memory_space<vmem>>, %arg2: memref<16x128xf32, #tpu.memory_space<vmem>>) attributes {dimension_semantics = [#tpu.dimension_semantics<parallel>], iteration_bounds = array<i64: 1>, scalar_prefetch = 0 : i64, scratch_operands = 0 : i64, tpu.core_type = #tpu.core_type<tc>, window_params = [{transform_indices = @transform_0, window_bounds = array<i64: 16, 128>}, {transform_indices = @transform_1, window_bounds = array<i64: 16, 128>}]} {
    %c0 = arith.constant 0 : index
    %c0_0 = arith.constant 0 : index
    %0 = vector.load %arg1[%c0, %c0_0] : memref<16x128xf32, #tpu.memory_space<vmem>>, vector<16x128xf32>
    %cst = arith.constant 1.000000e+01 : f32
    %1 = vector.broadcast %cst : f32 to vector<16x128xf32>
    %2 = arith.mulf %0, %1 : vector<16x128xf32>
    %3 = math.exp %2 : vector<16x128xf32>
    %c0_1 = arith.constant 0 : index
    %c0_2 = arith.constant 0 : index
    %4 = vector.load %arg2[%c0_1, %c0_2] : memref<16x128xf32, #tpu.memory_space<vmem>>, vector<16x128xf32>
    tpu.vector_store %arg2[%c0_1, %c0_2], %3 {strides = array<i32>} : memref<16x128xf32, #tpu.memory_space<vmem>>, vector<16x128xf32>,
    return
  }
  func.func @transform_0(%arg0: i32) -> (i32, i32) {
    %c0_i32 = arith.constant 0 : i32
    %c0_i32_0 = arith.constant 0 : i32
    return %arg0, %c0_i32 : i32, i32
  }
  func.func @transform_1(%arg0: i32) -> (i32, i32) {
    %c0_i32 = arith.constant 0 : i32
    %c0_i32_0 = arith.constant 0 : i32
    return %arg0, %c0_i32 : i32, i32
  }
}

</mosaic_0001>

<llo_original>
// kernel: tpu_custom_call.1
$region0: #{tpu_custom_call.1}
  #allocation0 [shape = 'u32[]', space=smem, size = 0x4, offset = 0x4, fixed_abs, tag = 'smem constant byte address 0x4 - core index']
  #allocation1 [shape = 'u32[144,128]{1,0:T(1,128)}', space=vmem, size = 0x12000, scoped, tag = 'internal scratch']
  %s0 = inlined_call_operand.hbm [shape: f32[16,128], index: 0, kind: input, shape index: {}]
  %s1 = inlined_call_operand.hbm [shape: f32[16,128], index: 1, kind: output, shape index: {}]
  %s2 = sld [smem:[#allocation0]]
  $region18: #{tpu_custom_call.1} parent=0
    _
  %s4 = ssub.s32 1, %s2
  %s5 = scalar_select 0, %s4, %s2
  $region1: #{tpu_custom_call.1} parent=0
    #allocation2 [shape = 'u8[8192]{0}', space=vmem, size = 0x2000, scoped, tag = 'input window, operand 0, single buffered']
    #allocation3 [shape = 's32[1]{0}', space=sflag, size = 0x4, scoped, tag = 'scoped memory for tpu_custom_call.1']
    #allocation4 [shape = 's32[1]{0}', space=sflag, size = 0x4, scoped, tag = 'scoped memory for tpu_custom_call.1']
    #allocation5 [shape = 'u8[8192]{0}', space=vmem, size = 0x2000, scoped, tag = 'output window, operand 0, single buffered']
    %6 = vsyncpa [#allocation3], 0
    %7 = vsyncpa [#allocation4], 0
    // Predicated region
    $region2: #{tpu_custom_call.1} parent=1 // pred_check
      _
    $region3: #{tpu_custom_call.1} parent=1 // pred_check_branch
      %9 = sbr.rel (0) target = $region5
    $region4: #{tpu_custom_call.1} parent=1 // pred_region
      %s11 = ssub.s32 256, 256
      %12 = vsyncadd [#allocation3], %s11
      %s13 = sshll.u32 [#allocation2], 4
      %s14 = int_to_ptr.vmem [resolvable:$true] %s13
      %19 = dma.hbm_to_vmem [thread:$0]  %s0, 256, %s14, [#allocation3], 128, 128, 8
    $region5: #{tpu_custom_call.1} parent=1 // pred_fallthru
      _
    // Predicated region
    $region6: #{tpu_custom_call.1} parent=1 // pred_check
      _
    $region7: #{tpu_custom_call.1} parent=1 // pred_check_branch
      %21 = sbr.rel (0) target = $region9
    $region8: #{tpu_custom_call.1} parent=1 // pred_region
      %22 = dma.done [#allocation3], 256
    $region9: #{tpu_custom_call.1} parent=1 // pred_fallthru
      _
    %v23 = vld [vmem:[#allocation2] sm:$0xff]
    %v24 = vld [vmem:[#allocation2 + $0x8] sm:$0xff]
    %v25 = vmul.f32 %v23, 10.0
    %v26 = vmul.f32 %v24, 10.0
    %v27 = vmul.f32 %v25, 1.442695
    %v28 = vpow.pop %v27
    %v29 = vmul.f32 %v26, 1.442695
    %v30 = vpow.pop %v29
    %31 = vst [vmem:[#allocation5] sm:$0xff] %v28
    %32 = vst [vmem:[#allocation5 + $0x8] sm:$0xff] %v30
    // Predicated region
    $region10: #{tpu_custom_call.1} parent=1 // pred_check
      _
    $region11: #{tpu_custom_call.1} parent=1 // pred_check_branch
      %34 = sbr.rel (0) target = $region13
    $region12: #{tpu_custom_call.1} parent=1 // pred_region
      %s36 = ssub.s32 256, 256
      %37 = vsyncadd [#allocation4], %s36
      %s38 = sshll.u32 [#allocation5], 4
      %s39 = int_to_ptr.vmem [resolvable:$true] %s38
      %44 = dma.vmem_to_hbm [thread:$0]  %s39, 256, %s1, [#allocation4], 128, 128, 8
    $region13: #{tpu_custom_call.1} parent=1 // pred_fallthru
      _
    // Predicated region
    $region14: #{tpu_custom_call.1} parent=1 // pred_check
      _
    $region15: #{tpu_custom_call.1} parent=1 // pred_check_branch
      %46 = sbr.rel (0) target = $region17
    $region16: #{tpu_custom_call.1} parent=1 // pred_region
      %47 = dma.done [#allocation4], 256
    $region17: #{tpu_custom_call.1} parent=1 // pred_fallthru
      _
    %48 = vsyncpa [#allocation3], 1
    %49 = vsyncpa [#allocation4], 1

</llo_original>
